<compile_context>
chip_gen: v5e
topology: v5e:2x2
jax: 0.10.0
libtpu: 0.0.40
codegen_flags: <defaults>
</compile_context>

<pallas_src>
import functools

import jax
import jax.numpy as jnp
from jax.experimental import pallas as pl
from jax.experimental.pallas import tpu as pltpu


def _round_up(a: int, b: int) -> int:
    return (a + b - 1) // b * b


def classifier_kernel(x_ref,
                      w1_ref, b1_ref,
                      w2_ref, b2_ref,
                      w3_ref, b3_ref,
                      w4_ref, b4_ref,
                      w5d_ref, b5d_ref,
                      out_ref):
    """One batch tile, transposed layout: x_ref (x_in, T), out_ref (2, T)."""
    x_t = x_ref[...]

    h = jnp.dot(w1_ref[...], x_t, preferred_element_type=jnp.float32) + b1_ref[...]
    h = jnp.maximum(h, 0.0)

    h = jnp.dot(w2_ref[...], h, preferred_element_type=jnp.float32) + b2_ref[...]
    h = jnp.maximum(h, 0.0)

    h = jnp.dot(w3_ref[...], h, preferred_element_type=jnp.float32) + b3_ref[...]
    h = jnp.maximum(h, 0.0)

    h = jnp.dot(w4_ref[...], h, preferred_element_type=jnp.float32) + b4_ref[...]
    h = jnp.maximum(h, 0.0)

    # Folded head: d = (w5[1]-w5[0]) @ h + (b5[1]-b5[0]), shape (1, T).
    d = jnp.dot(w5d_ref[...], h, preferred_element_type=jnp.float32) + b5d_ref[...]

    # softmax([z0, z1]) == [sigmoid(z0 - z1), sigmoid(z1 - z0)]  (exact identity).
    p1 = 1.0 / (1.0 + jnp.exp(-d))
    p0 = 1.0 / (1.0 + jnp.exp(d))
    out_ref[0:1, :] = p0.astype(out_ref.dtype)
    out_ref[1:2, :] = p1.astype(out_ref.dtype)


@functools.partial(jax.jit, static_argnames=("max_tile",))
def classifier_forward(x, params, *, max_tile=1024):
    """x: (N, x_in) f32.  params: torch-layout [(W (out,in), b (out,)) x 5]."""
    n, x_in = x.shape
    (w1, b1), (w2, b2), (w3, b3), (w4, b4), (w5, b5) = params
    hidden = w1.shape[0]

    f32 = lambda a: a.astype(jnp.float32)
    col = lambda b: f32(b).reshape(-1, 1)

    # Fold the 2-class head into a single logit-difference row.
    w5d = f32(w5[1:2, :] - w5[0:1, :])              # (1, H)
    b5d = f32(b5[1] - b5[0]).reshape(1, 1)          # (1, 1)

    # Lane-dim blocks must be 128-divisible (or span the full padded array).
    tile = min(max_tile, _round_up(n, 128))
    n_pad = _round_up(n, tile)
    grid = (n_pad // tile,)

    # Transposed, zero-padded input (x_in, n_pad); padded columns produce
    # finite values and are sliced away below.
    x_t = jnp.zeros((x_in, n_pad), jnp.float32).at[:, :n].set(f32(x).T)

    resident = lambda shape: pl.BlockSpec(shape, lambda i: (0, 0))

    flops = 2 * n_pad * (x_in * hidden + 3 * hidden * hidden + hidden)
    bytes_accessed = 4 * (x_in * n_pad + 2 * n_pad
                          + x_in * hidden + 3 * hidden * hidden + hidden
                          + 4 * hidden + 1)

    out_t = pl.pallas_call(
        classifier_kernel,
        out_shape=jax.ShapeDtypeStruct((2, n_pad), jnp.float32),
        grid=grid,
        in_specs=[
            pl.BlockSpec((x_in, tile), lambda i: (0, i)),   # streamed batch tile
            resident((hidden, x_in)), resident((hidden, 1)),
            resident((hidden, hidden)), resident((hidden, 1)),
            resident((hidden, hidden)), resident((hidden, 1)),
            resident((hidden, hidden)), resident((hidden, 1)),
            resident((1, hidden)), resident((1, 1)),
        ],
        out_specs=pl.BlockSpec((2, tile), lambda i: (0, i)),
        compiler_params=pltpu.CompilerParams(
            dimension_semantics=("parallel",)),
        cost_estimate=pl.CostEstimate(
            flops=flops,
            transcendentals=2 * n_pad,
            bytes_accessed=bytes_accessed),
    )(x_t, f32(w1), col(b1), f32(w2), col(b2), f32(w3), col(b3),
      f32(w4), col(b4), w5d, b5d)

    # Back to (N, 2), dropping the padded batch columns.
    return out_t[:, :n].T


def init_params(key, x_in, hidden):
    """Deterministic init mimicking torch.nn.Linear default, torch layout (out, in)."""
    dims = [(x_in, hidden), (hidden, hidden), (hidden, hidden),
            (hidden, hidden), (hidden, 2)]
    params = []
    for fan_in, fan_out in dims:
        key, kw, kb = jax.random.split(key, 3)
        bound = 1.0 / (fan_in ** 0.5)
        w = jax.random.uniform(kw, (fan_out, fan_in), jnp.float32, -bound, bound)
        b = jax.random.uniform(kb, (fan_out,), jnp.float32, -bound, bound)
        params.append((w, b))
    return params


def reference_forward(x, params):
    """Plain-JAX reference (full-precision matmuls, stable softmax)."""
    h = x
    for i, (w, b) in enumerate(params):
        h = jnp.dot(h, w.T, precision=jax.lax.Precision.HIGHEST) + b
        if i < len(params) - 1:
            h = jnp.maximum(h, 0.0)
    m = jnp.max(h, axis=-1, keepdims=True)
    e = jnp.exp(h - m)
    return e / jnp.sum(e, axis=-1, keepdims=True)


if __name__ == "__main__":
    key = jax.random.PRNGKey(0)
    batch, x_in, hidden = 8, 2, 32

    key, kx = jax.random.split(key)
    x = jax.random.normal(kx, (batch, x_in), jnp.float32)
    params = init_params(key, x_in, hidden)

    out = jax.block_until_ready(classifier_forward(x, params))
    ref = reference_forward(x, params)

    assert out.shape == (batch, 2)
    assert jnp.allclose(out, ref, atol=1e-5, rtol=1e-5), "mismatch vs reference"
    assert jnp.allclose(jnp.sum(out, axis=-1), 1.0, atol=1e-5), "rows must sum to 1"

    print("KERNEL_OK")
</pallas_src>

<mosaic_0001>
module attributes {stable_mosaic.version = 11 : i64} {
  func.func @classifier_kernel(%arg0: i32, %arg1: memref<2x128xf32, #tpu.memory_space<vmem>>, %arg2: memref<32x2xf32, #tpu.memory_space<vmem>>, %arg3: memref<32x1xf32, #tpu.memory_space<vmem>>, %arg4: memref<32x32xf32, #tpu.memory_space<vmem>>, %arg5: memref<32x1xf32, #tpu.memory_space<vmem>>, %arg6: memref<32x32xf32, #tpu.memory_space<vmem>>, %arg7: memref<32x1xf32, #tpu.memory_space<vmem>>, %arg8: memref<32x32xf32, #tpu.memory_space<vmem>>, %arg9: memref<32x1xf32, #tpu.memory_space<vmem>>, %arg10: memref<1x32xf32, #tpu.memory_space<vmem>>, %arg11: memref<1x1xf32, #tpu.memory_space<vmem>>, %arg12: memref<2x128xf32, #tpu.memory_space<vmem>>) attributes {dimension_semantics = [#tpu.dimension_semantics<parallel>], iteration_bounds = array<i64: 1>, scalar_prefetch = 0 : i64, scratch_operands = 0 : i64, tpu.core_type = #tpu.core_type<tc>, window_params = [{transform_indices = @transform_0, window_bounds = array<i64: 2, 128>}, {pipeline_mode = #tpu.pipeline_mode<synchronous>, transform_indices = @transform_1, window_bounds = array<i64: 32, 2>}, {pipeline_mode = #tpu.pipeline_mode<synchronous>, transform_indices = @transform_2, window_bounds = array<i64: 32, 1>}, {pipeline_mode = #tpu.pipeline_mode<synchronous>, transform_indices = @transform_3, window_bounds = array<i64: 32, 32>}, {pipeline_mode = #tpu.pipeline_mode<synchronous>, transform_indices = @transform_4, window_bounds = array<i64: 32, 1>}, {pipeline_mode = #tpu.pipeline_mode<synchronous>, transform_indices = @transform_5, window_bounds = array<i64: 32, 32>}, {pipeline_mode = #tpu.pipeline_mode<synchronous>, transform_indices = @transform_6, window_bounds = array<i64: 32, 1>}, {pipeline_mode = #tpu.pipeline_mode<synchronous>, transform_indices = @transform_7, window_bounds = array<i64: 32, 32>}, {pipeline_mode = #tpu.pipeline_mode<synchronous>, transform_indices = @transform_8, window_bounds = array<i64: 32, 1>}, {pipeline_mode = #tpu.pipeline_mode<synchronous>, transform_indices = @transform_9, window_bounds = array<i64: 1, 32>}, {pipeline_mode = #tpu.pipeline_mode<synchronous>, transform_indices = @transform_10, window_bounds = array<i64: 1, 1>}, {transform_indices = @transform_11, window_bounds = array<i64: 2, 128>}]} {
    %c0 = arith.constant 0 : index
    %c0_0 = arith.constant 0 : index
    %0 = vector.load %arg1[%c0, %c0_0] : memref<2x128xf32, #tpu.memory_space<vmem>>, vector<2x128xf32>
    %c0_1 = arith.constant 0 : index
    %c0_2 = arith.constant 0 : index
    %1 = vector.load %arg2[%c0_1, %c0_2] : memref<32x2xf32, #tpu.memory_space<vmem>>, vector<32x2xf32>
    %cst = arith.constant dense<0.000000e+00> : vector<32x128xf32>
    %2 = tpu.matmul %1, %0, %cst {dimension_numbers = #tpu.dot_dimension_numbers<[1], [0], [0], [1], [0, 0, 1, 1], [], []>} : vector<32x2xf32>, vector<2x128xf32>, vector<32x128xf32> -> vector<32x128xf32>
    %c0_3 = arith.constant 0 : index
    %c0_4 = arith.constant 0 : index
    %3 = vector.load %arg3[%c0_3, %c0_4] : memref<32x1xf32, #tpu.memory_space<vmem>>, vector<32x1xf32>
    %4 = vector.broadcast %3 : vector<32x1xf32> to vector<32x128xf32>
    %5 = arith.addf %2, %4 : vector<32x128xf32>
    %cst_5 = arith.constant 0.000000e+00 : f32
    %6 = vector.broadcast %cst_5 : f32 to vector<32x128xf32>
    %7 = arith.maximumf %5, %6 : vector<32x128xf32>
    %c0_6 = arith.constant 0 : index
    %c0_7 = arith.constant 0 : index
    %8 = vector.load %arg4[%c0_6, %c0_7] : memref<32x32xf32, #tpu.memory_space<vmem>>, vector<32x32xf32>
    %cst_8 = arith.constant dense<0.000000e+00> : vector<32x128xf32>
    %9 = tpu.matmul %8, %7, %cst_8 {dimension_numbers = #tpu.dot_dimension_numbers<[1], [0], [0], [1], [0, 0, 1, 1], [], []>} : vector<32x32xf32>, vector<32x128xf32>, vector<32x128xf32> -> vector<32x128xf32>
    %c0_9 = arith.constant 0 : index
    %c0_10 = arith.constant 0 : index
    %10 = vector.load %arg5[%c0_9, %c0_10] : memref<32x1xf32, #tpu.memory_space<vmem>>, vector<32x1xf32>
    %11 = vector.broadcast %10 : vector<32x1xf32> to vector<32x128xf32>
    %12 = arith.addf %9, %11 : vector<32x128xf32>
    %cst_11 = arith.constant 0.000000e+00 : f32
    %13 = vector.broadcast %cst_11 : f32 to vector<32x128xf32>
    %14 = arith.maximumf %12, %13 : vector<32x128xf32>
    %c0_12 = arith.constant 0 : index
    %c0_13 = arith.constant 0 : index
    %15 = vector.load %arg6[%c0_12, %c0_13] : memref<32x32xf32, #tpu.memory_space<vmem>>, vector<32x32xf32>
    %cst_14 = arith.constant dense<0.000000e+00> : vector<32x128xf32>
    %16 = tpu.matmul %15, %14, %cst_14 {dimension_numbers = #tpu.dot_dimension_numbers<[1], [0], [0], [1], [0, 0, 1, 1], [], []>} : vector<32x32xf32>, vector<32x128xf32>, vector<32x128xf32> -> vector<32x128xf32>
    %c0_15 = arith.constant 0 : index
    %c0_16 = arith.constant 0 : index
    %17 = vector.load %arg7[%c0_15, %c0_16] : memref<32x1xf32, #tpu.memory_space<vmem>>, vector<32x1xf32>
    %18 = vector.broadcast %17 : vector<32x1xf32> to vector<32x128xf32>
    %19 = arith.addf %16, %18 : vector<32x128xf32>
    %cst_17 = arith.constant 0.000000e+00 : f32
    %20 = vector.broadcast %cst_17 : f32 to vector<32x128xf32>
    %21 = arith.maximumf %19, %20 : vector<32x128xf32>
    %c0_18 = arith.constant 0 : index
    %c0_19 = arith.constant 0 : index
    %22 = vector.load %arg8[%c0_18, %c0_19] : memref<32x32xf32, #tpu.memory_space<vmem>>, vector<32x32xf32>
    %cst_20 = arith.constant dense<0.000000e+00> : vector<32x128xf32>
    %23 = tpu.matmul %22, %21, %cst_20 {dimension_numbers = #tpu.dot_dimension_numbers<[1], [0], [0], [1], [0, 0, 1, 1], [], []>} : vector<32x32xf32>, vector<32x128xf32>, vector<32x128xf32> -> vector<32x128xf32>
    %c0_21 = arith.constant 0 : index
    %c0_22 = arith.constant 0 : index
    %24 = vector.load %arg9[%c0_21, %c0_22] : memref<32x1xf32, #tpu.memory_space<vmem>>, vector<32x1xf32>
    %25 = vector.broadcast %24 : vector<32x1xf32> to vector<32x128xf32>
    %26 = arith.addf %23, %25 : vector<32x128xf32>
    %cst_23 = arith.constant 0.000000e+00 : f32
    %27 = vector.broadcast %cst_23 : f32 to vector<32x128xf32>
    %28 = arith.maximumf %26, %27 : vector<32x128xf32>
    %c0_24 = arith.constant 0 : index
    %c0_25 = arith.constant 0 : index
    %29 = vector.load %arg10[%c0_24, %c0_25] : memref<1x32xf32, #tpu.memory_space<vmem>>, vector<1x32xf32>
    %cst_26 = arith.constant dense<0.000000e+00> : vector<1x128xf32>
    %30 = tpu.matmul %29, %28, %cst_26 {dimension_numbers = #tpu.dot_dimension_numbers<[1], [0], [0], [1], [0, 0, 1, 1], [], []>} : vector<1x32xf32>, vector<32x128xf32>, vector<1x128xf32> -> vector<1x128xf32>
    %c0_27 = arith.constant 0 : index
    %c0_28 = arith.constant 0 : index
    %31 = vector.load %arg11[%c0_27, %c0_28] : memref<1x1xf32, #tpu.memory_space<vmem>>, vector<1x1xf32>
    %32 = vector.broadcast %31 : vector<1x1xf32> to vector<1x128xf32>
    %33 = arith.addf %30, %32 : vector<1x128xf32>
    %cst_29 = arith.constant 0.000000e+00 : f32
    %34 = vector.broadcast %cst_29 : f32 to vector<1x128xf32>
    %35 = arith.subf %34, %33 : vector<1x128xf32>
    %36 = math.exp %35 : vector<1x128xf32>
    %cst_30 = arith.constant 1.000000e+00 : f32
    %37 = vector.broadcast %cst_30 : f32 to vector<1x128xf32>
    %38 = arith.addf %37, %36 : vector<1x128xf32>
    %cst_31 = arith.constant 1.000000e+00 : f32
    %39 = vector.broadcast %cst_31 : f32 to vector<1x128xf32>
    %40 = arith.divf %39, %38 : vector<1x128xf32>
    %41 = math.exp %33 : vector<1x128xf32>
    %cst_32 = arith.constant 1.000000e+00 : f32
    %42 = vector.broadcast %cst_32 : f32 to vector<1x128xf32>
    %43 = arith.addf %42, %41 : vector<1x128xf32>
    %cst_33 = arith.constant 1.000000e+00 : f32
    %44 = vector.broadcast %cst_33 : f32 to vector<1x128xf32>
    %45 = arith.divf %44, %43 : vector<1x128xf32>
    %c0_34 = arith.constant 0 : index
    %c0_35 = arith.constant 0 : index
    %46 = vector.load %arg12[%c0_34, %c0_35] : memref<2x128xf32, #tpu.memory_space<vmem>>, vector<1x128xf32>
    tpu.vector_store %arg12[%c0_34, %c0_35], %45 {strides = array<i32>} : memref<2x128xf32, #tpu.memory_space<vmem>>, vector<1x128xf32>,
    %c1 = arith.constant 1 : index
    %c0_36 = arith.constant 0 : index
    %47 = vector.load %arg12[%c1, %c0_36] : memref<2x128xf32, #tpu.memory_space<vmem>>, vector<1x128xf32>
    tpu.vector_store %arg12[%c1, %c0_36], %40 {strides = array<i32>} : memref<2x128xf32, #tpu.memory_space<vmem>>, vector<1x128xf32>,
    return
  }
  func.func @transform_0(%arg0: i32) -> (i32, i32) {
    %c0_i32 = arith.constant 0 : i32
    %c0_i32_0 = arith.constant 0 : i32
    return %c0_i32, %arg0 : i32, i32
  }
  func.func @transform_1(%arg0: i32) -> (i32, i32) {
    %c0_i32 = arith.constant 0 : i32
    %c0_i32_0 = arith.constant 0 : i32
    %c0_i32_1 = arith.constant 0 : i32
    return %c0_i32, %c0_i32_0 : i32, i32
  }
  func.func @transform_2(%arg0: i32) -> (i32, i32) {
    %c0_i32 = arith.constant 0 : i32
    %c0_i32_0 = arith.constant 0 : i32
    %c0_i32_1 = arith.constant 0 : i32
    return %c0_i32, %c0_i32_0 : i32, i32
  }
  func.func @transform_3(%arg0: i32) -> (i32, i32) {
    %c0_i32 = arith.constant 0 : i32
    %c0_i32_0 = arith.constant 0 : i32
    %c0_i32_1 = arith.constant 0 : i32
    return %c0_i32, %c0_i32_0 : i32, i32
  }
  func.func @transform_4(%arg0: i32) -> (i32, i32) {
    %c0_i32 = arith.constant 0 : i32
    %c0_i32_0 = arith.constant 0 : i32
    %c0_i32_1 = arith.constant 0 : i32
    return %c0_i32, %c0_i32_0 : i32, i32
  }
  func.func @transform_5(%arg0: i32) -> (i32, i32) {
    %c0_i32 = arith.constant 0 : i32
    %c0_i32_0 = arith.constant 0 : i32
    %c0_i32_1 = arith.constant 0 : i32
    return %c0_i32, %c0_i32_0 : i32, i32
  }
  func.func @transform_6(%arg0: i32) -> (i32, i32) {
    %c0_i32 = arith.constant 0 : i32
    %c0_i32_0 = arith.constant 0 : i32
    %c0_i32_1 = arith.constant 0 : i32
    return %c0_i32, %c0_i32_0 : i32, i32
  }
  func.func @transform_7(%arg0: i32) -> (i32, i32) {
    %c0_i32 = arith.constant 0 : i32
    %c0_i32_0 = arith.constant 0 : i32
    %c0_i32_1 = arith.constant 0 : i32
    return %c0_i32, %c0_i32_0 : i32, i32
  }
  func.func @transform_8(%arg0: i32) -> (i32, i32) {
    %c0_i32 = arith.constant 0 : i32
    %c0_i32_0 = arith.constant 0 : i32
    %c0_i32_1 = arith.constant 0 : i32
    return %c0_i32, %c0_i32_0 : i32, i32
  }
  func.func @transform_9(%arg0: i32) -> (i32, i32) {
    %c0_i32 = arith.constant 0 : i32
    %c0_i32_0 = arith.constant 0 : i32
    %c0_i32_1 = arith.constant 0 : i32
    return %c0_i32, %c0_i32_0 : i32, i32
  }
  func.func @transform_10(%arg0: i32) -> (i32, i32) {
    %c0_i32 = arith.constant 0 : i32
    %c0_i32_0 = arith.constant 0 : i32
    %c0_i32_1 = arith.constant 0 : i32
    return %c0_i32, %c0_i32_0 : i32, i32
  }
  func.func @transform_11(%arg0: i32) -> (i32, i32) {
    %c0_i32 = arith.constant 0 : i32
    %c0_i32_0 = arith.constant 0 : i32
    return %c0_i32, %arg0 : i32, i32
  }
}

</mosaic_0001>

<llo_original>
// kernel: classifier_forward.1
$region0: #{classifier_forward.1}
  #allocation0 [shape = 'u32[]', space=smem, size = 0x4, offset = 0x4, fixed_abs, tag = 'smem constant byte address 0x4 - core index']
  #allocation1 [shape = 'u32[72,128]{1,0:T(1,128)}', space=vmem, size = 0x9000, scoped, tag = 'internal scratch']
  #allocation2 [shape = 'f32[1,1]{1,0:T(1,128)S(1)}', space=vmem, size = 0x200, scoped, tag = 'scoped memory for classifier_forward.1']
  %s0 = inlined_call_operand.vmem [shape: f32[2,128], index: 0, kind: input, shape index: {}]
  %s1 = inlined_call_operand.vmem [shape: f32[32,2], index: 1, kind: input, shape index: {}]
  %s2 = inlined_call_operand.vmem [shape: f32[32,1], index: 2, kind: input, shape index: {}]
  %s3 = inlined_call_operand.vmem [shape: f32[32,32], index: 3, kind: input, shape index: {}]
  %s4 = inlined_call_operand.vmem [shape: f32[32,1], index: 4, kind: input, shape index: {}]
  %s5 = inlined_call_operand.vmem [shape: f32[32,32], index: 5, kind: input, shape index: {}]
  %s6 = inlined_call_operand.vmem [shape: f32[32,1], index: 6, kind: input, shape index: {}]
  %s7 = inlined_call_operand.vmem [shape: f32[32,32], index: 7, kind: input, shape index: {}]
  %s8 = inlined_call_operand.vmem [shape: f32[32,1], index: 8, kind: input, shape index: {}]
  %s9 = inlined_call_operand.vmem [shape: f32[1,32], index: 9, kind: input, shape index: {}]
  %s10 = inlined_call_operand.<no memory space> [shape: f32[1,1], index: 10, kind: input, shape index: {}]
  %s11 = inlined_call_operand.vmem [shape: f32[2,128], index: 11, kind: output, shape index: {}]
  %s12 = sld [smem:[#allocation0]]
  $region54: #{classifier_forward.1} parent=0
    _
  %s14 = ssub.s32 1, %s12
  %s15 = scalar_select 0, %s14, %s12
  %v16 = vstv %s10
  %17 = vst [vmem:[#allocation2] sm:$0x1] %v16
  // Predicated region
  $region2: #{classifier_forward.1} parent=0 // pred_check
    _
  $region3: #{classifier_forward.1} parent=0 // pred_check_branch
    %19 = sbr.rel (0) target = $region5
  $region4: #{classifier_forward.1} parent=0 // pred_region
    _
  $region5: #{classifier_forward.1} parent=0 // pred_fallthru
    _
  // Predicated region
  $region6: #{classifier_forward.1} parent=0 // pred_check
    _
  $region7: #{classifier_forward.1} parent=0 // pred_check_branch
    %21 = sbr.rel (0) target = $region9
  $region8: #{classifier_forward.1} parent=0 // pred_region
    _
  $region9: #{classifier_forward.1} parent=0 // pred_fallthru
    _
  // Predicated region
  $region10: #{classifier_forward.1} parent=0 // pred_check
    _
  $region11: #{classifier_forward.1} parent=0 // pred_check_branch
    %23 = sbr.rel (0) target = $region13
  $region12: #{classifier_forward.1} parent=0 // pred_region
    _
  $region13: #{classifier_forward.1} parent=0 // pred_fallthru
    _
  // Predicated region
  $region14: #{classifier_forward.1} parent=0 // pred_check
    _
  $region15: #{classifier_forward.1} parent=0 // pred_check_branch
    %25 = sbr.rel (0) target = $region17
  $region16: #{classifier_forward.1} parent=0 // pred_region
    _
  $region17: #{classifier_forward.1} parent=0 // pred_fallthru
    _
  // Predicated region
  $region18: #{classifier_forward.1} parent=0 // pred_check
    _
  $region19: #{classifier_forward.1} parent=0 // pred_check_branch
    %27 = sbr.rel (0) target = $region21
  $region20: #{classifier_forward.1} parent=0 // pred_region
    _
  $region21: #{classifier_forward.1} parent=0 // pred_fallthru
    _
  // Predicated region
  $region22: #{classifier_forward.1} parent=0 // pred_check
    _
  $region23: #{classifier_forward.1} parent=0 // pred_check_branch
    %29 = sbr.rel (0) target = $region25
  $region24: #{classifier_forward.1} parent=0 // pred_region
    _
  $region25: #{classifier_forward.1} parent=0 // pred_fallthru
    _
  // Predicated region
  $region26: #{classifier_forward.1} parent=0 // pred_check
    _
  $region27: #{classifier_forward.1} parent=0 // pred_check_branch
    %31 = sbr.rel (0) target = $region29
  $region28: #{classifier_forward.1} parent=0 // pred_region
    _
  $region29: #{classifier_forward.1} parent=0 // pred_fallthru
    _
  // Predicated region
  $region30: #{classifier_forward.1} parent=0 // pred_check
    _
  $region31: #{classifier_forward.1} parent=0 // pred_check_branch
    %33 = sbr.rel (0) target = $region33
  $region32: #{classifier_forward.1} parent=0 // pred_region
    _
  $region33: #{classifier_forward.1} parent=0 // pred_fallthru
    _
  // Predicated region
  $region34: #{classifier_forward.1} parent=0 // pred_check
    _
  $region35: #{classifier_forward.1} parent=0 // pred_check_branch
    %35 = sbr.rel (0) target = $region37
  $region36: #{classifier_forward.1} parent=0 // pred_region
    _
  $region37: #{classifier_forward.1} parent=0 // pred_fallthru
    _
  // Predicated region
  $region38: #{classifier_forward.1} parent=0 // pred_check
    _
  $region39: #{classifier_forward.1} parent=0 // pred_check_branch
    %37 = sbr.rel (0) target = $region41
  $region40: #{classifier_forward.1} parent=0 // pred_region
    _
  $region41: #{classifier_forward.1} parent=0 // pred_fallthru
    _
  // Predicated region
  $region42: #{classifier_forward.1} parent=0 // pred_check
    _
  $region43: #{classifier_forward.1} parent=0 // pred_check_branch
    %39 = sbr.rel (0) target = $region45
  $region44: #{classifier_forward.1} parent=0 // pred_region
    _
  $region45: #{classifier_forward.1} parent=0 // pred_fallthru
    _
  %v40 = vld [vmem:[%s0] sm:$0x3]
  %v41 = vld [vmem:[%s1] sm:$0xff]
  %v42 = vld [vmem:[%s1 + $0x8] sm:$0xff]
  %v43 = vld [vmem:[%s1 + $0x10] sm:$0xff]
  %v44 = vld [vmem:[%s1 + $0x18] sm:$0xff]
  %v45 = vld [vmem:[%s2] sm:$0xff]
  %v46 = vld [vmem:[%s2 + $0x8] sm:$0xff]
  %v47 = vld [vmem:[%s2 + $0x10] sm:$0xff]
  %v48 = vld [vmem:[%s2 + $0x18] sm:$0xff]
  %50 = vset.pattern.permute.xlu0 0
  %51 = vperm.xlu0 %50, %v45
  %v52 = vpop.permute.xlu0 %51
  %55 = vset.pattern.permute.xlu0 0
  %56 = vperm.xlu0 %55, %v46
  %v57 = vpop.permute.xlu0 %56
  %60 = vset.pattern.permute.xlu0 0
  %61 = vperm.xlu0 %60, %v47
  %v62 = vpop.permute.xlu0 %61
  %65 = vset.pattern.permute.xlu0 0
  %66 = vperm.xlu0 %65, %v48
  %v67 = vpop.permute.xlu0 %66
  %vm69 = vcmask 15360
  %v71 = vsel %vm69, %v41, 0
  %v74 = vsel %vm69, %v42, 0
  %v77 = vsel %vm69, %v43, 0
  %v80 = vsel %vm69, %v44, 0
  %vm82 = vcmask 1041408
  %v84 = vsel %vm82, %v40, 0
  %86 = vmatpush.msra.mxu0 0.0
  %87 = vmatpush.msra.mxu0 0.0
  %88 = vmatpush.msra.mxu0 0.0
  %89 = vmatpush.msra.mxu0 0.0
  %90 = vmatpush.msra.mxu0 0.0
  %91 = vmatpush.msra.mxu0 0.0
  %92 = vmatpush.msra.mxu0 0.0
  %93 = vmatpush.msra.mxu0 0.0
  %94 = vmatpush.msra.mxu0 0.0
  %95 = vmatpush.msra.mxu0 0.0
  %96 = vmatpush.msra.mxu0 0.0
  %97 = vmatpush.msra.mxu0 0.0
  %98 = vmatpush.msra.mxu0 0.0
  %99 = vmatpush.msra.mxu0 0.0
  %100 = vmatpush.msra.mxu0 0.0
  %101 = vmatpush.msra.mxu0 %v84
  %102 = vmatmul.f32.gmra.mxu0 %v71
  %v103 = vpop.f32.mrf.mxu0
  %v104 = vadd.f32 %v52, %v103
  %105 = vmatmul.f32.gmra.mxu0 %v74
  %v106 = vpop.f32.mrf.mxu0
  %v107 = vadd.f32 %v57, %v106
  %108 = vmatmul.f32.gmra.mxu0 %v77
  %v109 = vpop.f32.mrf.mxu0
  %v110 = vadd.f32 %v62, %v109
  %111 = vmatmul.f32.gmra.mxu0 %v80
  %v112 = vpop.f32.mrf.mxu0
  %v113 = vadd.f32 %v67, %v112
  %114 = vdwg.mxu0
  %v115 = vmax.f32 %v104, 0.0
  %v116 = vmax.f32 %v107, 0.0
  %v117 = vmax.f32 %v110, 0.0
  %v118 = vmax.f32 %v113, 0.0
  %v119 = vld [vmem:[%s3] sm:$0xff]
  %v120 = vld [vmem:[%s3 + $0x8] sm:$0xff]
  %v121 = vld [vmem:[%s3 + $0x10] sm:$0xff]
  %v122 = vld [vmem:[%s3 + $0x18] sm:$0xff]
  %v123 = vld [vmem:[%s4] sm:$0xff]
  %v124 = vld [vmem:[%s4 + $0x8] sm:$0xff]
  %v125 = vld [vmem:[%s4 + $0x10] sm:$0xff]
  %v126 = vld [vmem:[%s4 + $0x18] sm:$0xff]
  %128 = vset.pattern.permute.xlu0 0
  %129 = vperm.xlu0 %128, %v123
  %v130 = vpop.permute.xlu0 %129
  %133 = vset.pattern.permute.xlu0 0
  %134 = vperm.xlu0 %133, %v124
  %v135 = vpop.permute.xlu0 %134
  %138 = vset.pattern.permute.xlu0 0
  %139 = vperm.xlu0 %138, %v125
  %v140 = vpop.permute.xlu0 %139
  %143 = vset.pattern.permute.xlu0 0
  %144 = vperm.xlu0 %143, %v126
  %v145 = vpop.permute.xlu0 %144
  %vm147 = vcmask 261120
  %v149 = vsel %vm147, %v119, 0
  %v152 = vsel %vm147, %v120, 0
  %v155 = vsel %vm147, %v121, 0
  %v158 = vsel %vm147, %v122, 0
  %160 = vmatpush.msra.mxu0 0.0
  %161 = vmatpush.msra.mxu0 0.0
  %162 = vmatpush.msra.mxu0 0.0
  %163 = vmatpush.msra.mxu0 0.0
  %164 = vmatpush.msra.mxu0 0.0
  %165 = vmatpush.msra.mxu0 0.0
  %166 = vmatpush.msra.mxu0 0.0
  %167 = vmatpush.msra.mxu0 0.0
  %168 = vmatpush.msra.mxu0 0.0
  %169 = vmatpush.msra.mxu0 0.0
  %170 = vmatpush.msra.mxu0 0.0
  %171 = vmatpush.msra.mxu0 0.0
  %172 = vmatpush.msra.mxu0 %v118
  %173 = vmatpush.msra.mxu0 %v117
  %174 = vmatpush.msra.mxu0 %v116
  %175 = vmatpush.msra.mxu0 %v115
  %176 = vmatmul.f32.gmra.mxu0 %v149
  %v177 = vpop.f32.mrf.mxu0
  %v178 = vadd.f32 %v130, %v177
  %179 = vmatmul.f32.gmra.mxu0 %v152
  %v180 = vpop.f32.mrf.mxu0
  %v181 = vadd.f32 %v135, %v180
  %182 = vmatmul.f32.gmra.mxu0 %v155
  %v183 = vpop.f32.mrf.mxu0
  %v184 = vadd.f32 %v140, %v183
  %185 = vmatmul.f32.gmra.mxu0 %v158
  %v186 = vpop.f32.mrf.mxu0
  %v187 = vadd.f32 %v145, %v186
  %188 = vdwg.mxu0
  %v189 = vmax.f32 %v178, 0.0
  %v190 = vmax.f32 %v181, 0.0
  %v191 = vmax.f32 %v184, 0.0
  %v192 = vmax.f32 %v187, 0.0
  %v193 = vld [vmem:[%s5] sm:$0xff]
  %v194 = vld [vmem:[%s5 + $0x8] sm:$0xff]
  %v195 = vld [vmem:[%s5 + $0x10] sm:$0xff]
  %v196 = vld [vmem:[%s5 + $0x18] sm:$0xff]
  %v197 = vld [vmem:[%s6] sm:$0xff]
  %v198 = vld [vmem:[%s6 + $0x8] sm:$0xff]
  %v199 = vld [vmem:[%s6 + $0x10] sm:$0xff]
  %v200 = vld [vmem:[%s6 + $0x18] sm:$0xff]
  %202 = vset.pattern.permute.xlu0 0
  %203 = vperm.xlu0 %202, %v197
  %v204 = vpop.permute.xlu0 %203
  %207 = vset.pattern.permute.xlu0 0
  %208 = vperm.xlu0 %207, %v198
  %v209 = vpop.permute.xlu0 %208
  %212 = vset.pattern.permute.xlu0 0
  %213 = vperm.xlu0 %212, %v199
  %v214 = vpop.permute.xlu0 %213
  %217 = vset.pattern.permute.xlu0 0
  %218 = vperm.xlu0 %217, %v200
  %v219 = vpop.permute.xlu0 %218
  %v222 = vsel %vm147, %v193, 0
  %v225 = vsel %vm147, %v194, 0
  %v228 = vsel %vm147, %v195, 0
  %v231 = vsel %vm147, %v196, 0
  %233 = vmatpush.msra.mxu0 0.0
  %234 = vmatpush.msra.mxu0 0.0
  %235 = vmatpush.msra.mxu0 0.0
  %236 = vmatpush.msra.mxu0 0.0
  %237 = vmatpush.msra.mxu0 0.0
  %238 = vmatpush.msra.mxu0 0.0
  %239 = vmatpush.msra.mxu0 0.0
  %240 = vmatpush.msra.mxu0 0.0
  %241 = vmatpush.msra.mxu0 0.0
  %242 = vmatpush.msra.mxu0 0.0
  %243 = vmatpush.msra.mxu0 0.0
  %244 = vmatpush.msra.mxu0 0.0
  %245 = vmatpush.msra.mxu0 %v192
  %246 = vmatpush.msra.mxu0 %v191
  %247 = vmatpush.msra.mxu0 %v190
  %248 = vmatpush.msra.mxu0 %v189
  %249 = vmatmul.f32.gmra.mxu0 %v222
  %v250 = vpop.f32.mrf.mxu0
  %v251 = vadd.f32 %v204, %v250
  %252 = vmatmul.f32.gmra.mxu0 %v225
  %v253 = vpop.f32.mrf.mxu0
  %v254 = vadd.f32 %v209, %v253
  %255 = vmatmul.f32.gmra.mxu0 %v228
  %v256 = vpop.f32.mrf.mxu0
  %v257 = vadd.f32 %v214, %v256
  %258 = vmatmul.f32.gmra.mxu0 %v231
  %v259 = vpop.f32.mrf.mxu0
  %v260 = vadd.f32 %v219, %v259
  %261 = vdwg.mxu0
  %v262 = vmax.f32 %v251, 0.0
  %v263 = vmax.f32 %v254, 0.0
  %v264 = vmax.f32 %v257, 0.0
  %v265 = vmax.f32 %v260, 0.0
  %v266 = vld [vmem:[%s7] sm:$0xff]
  %v267 = vld [vmem:[%s7 + $0x8] sm:$0xff]
  %v268 = vld [vmem:[%s7 + $0x10] sm:$0xff]
  %v269 = vld [vmem:[%s7 + $0x18] sm:$0xff]
  %v270 = vld [vmem:[%s8] sm:$0xff]
  %v271 = vld [vmem:[%s8 + $0x8] sm:$0xff]
  %v272 = vld [vmem:[%s8 + $0x10] sm:$0xff]
  %v273 = vld [vmem:[%s8 + $0x18] sm:$0xff]
  %275 = vset.pattern.permute.xlu0 0
  %276 = vperm.xlu0 %275, %v270
  %v277 = vpop.permute.xlu0 %276
  %280 = vset.pattern.permute.xlu0 0
  %281 = vperm.xlu0 %280, %v271
  %v282 = vpop.permute.xlu0 %281
  %285 = vset.pattern.permute.xlu0 0
  %286 = vperm.xlu0 %285, %v272
  %v287 = vpop.permute.xlu0 %286
  %290 = vset.pattern.permute.xlu0 0
  %291 = vperm.xlu0 %290, %v273
  %v292 = vpop.permute.xlu0 %291
  %v295 = vsel %vm147, %v266, 0
  %v298 = vsel %vm147, %v267, 0
  %v301 = vsel %vm147, %v268, 0
  %v304 = vsel %vm147, %v269, 0
  %306 = vmatpush.msra.mxu0 0.0
  %307 = vmatpush.msra.mxu0 0.0
  %308 = vmatpush.msra.mxu0 0.0
  %309 = vmatpush.msra.mxu0 0.0
  %310 = vmatpush.msra.mxu0 0.0
  %311 = vmatpush.msra.mxu0 0.0
  %312 = vmatpush.msra.mxu0 0.0
  %313 = vmatpush.msra.mxu0 0.0
  %314 = vmatpush.msra.mxu0 0.0
  %315 = vmatpush.msra.mxu0 0.0
  %316 = vmatpush.msra.mxu0 0.0
  %317 = vmatpush.msra.mxu0 0.0
  %318 = vmatpush.msra.mxu0 %v265
  %319 = vmatpush.msra.mxu0 %v264
  %320 = vmatpush.msra.mxu0 %v263
  %321 = vmatpush.msra.mxu0 %v262
  %322 = vmatmul.f32.gmra.mxu0 %v295
  %v323 = vpop.f32.mrf.mxu0
  %v324 = vadd.f32 %v277, %v323
  %325 = vmatmul.f32.gmra.mxu0 %v298
  %v326 = vpop.f32.mrf.mxu0
  %v327 = vadd.f32 %v282, %v326
  %328 = vmatmul.f32.gmra.mxu0 %v301
  %v329 = vpop.f32.mrf.mxu0
  %v330 = vadd.f32 %v287, %v329
  %331 = vmatmul.f32.gmra.mxu0 %v304
  %v332 = vpop.f32.mrf.mxu0
  %v333 = vadd.f32 %v292, %v332
  %334 = vdwg.mxu0
  %v335 = vmax.f32 %v324, 0.0
  %v336 = vmax.f32 %v327, 0.0
  %v337 = vmax.f32 %v330, 0.0
  %v338 = vmax.f32 %v333, 0.0
  %v339 = vld [vmem:[%s9] sm:$0x1]
  %v340 = vld [vmem:[#allocation2] sm:$0x1]
  %342 = vset.pattern.permute.xlu0 0
  %343 = vperm.xlu0 %342, %v340
  %v344 = vpop.permute.xlu0 %343
  %v346 = vperm.slane %v344, 0
  %v348 = vsel %vm147, %v339, 0
  %350 = vmatpush.msra.mxu0 0.0
  %351 = vmatpush.msra.mxu0 0.0
  %352 = vmatpush.msra.mxu0 0.0
  %353 = vmatpush.msra.mxu0 0.0
  %354 = vmatpush.msra.mxu0 0.0
  %355 = vmatpush.msra.mxu0 0.0
  %356 = vmatpush.msra.mxu0 0.0
  %357 = vmatpush.msra.mxu0 0.0
  %358 = vmatpush.msra.mxu0 0.0
  %359 = vmatpush.msra.mxu0 0.0
  %360 = vmatpush.msra.mxu0 0.0
  %361 = vmatpush.msra.mxu0 0.0
  %362 = vmatpush.msra.mxu0 %v338
  %363 = vmatpush.msra.mxu0 %v337
  %364 = vmatpush.msra.mxu0 %v336
  %365 = vmatpush.msra.mxu0 %v335
  %366 = vmatmul.f32.gmra.mxu0 %v348
  %v367 = vpop.f32.mrf.mxu0
  %v368 = vadd.f32 %v346, %v367
  %369 = vdwg.mxu0
  %v370 = vsub.f32 0.0, %v368
  %v371 = vmul.f32 %v370, 1.442695
  %v372 = vpow.pop %v371
  %v373 = vadd.f32 %v372, 1.0
  %v374 = vrcp.pop %v373
  %v375 = vmul.f32 %v373, %v374
  %v376 = vsub.f32 1.0, %v375
  %v377 = vmul.f32 %v374, %v376
  %v378 = vadd.f32 %v374, %v377
  %vm379 = vweird.f32 %v373
  %vm380 = vweird.f32 %v374
  %vm381 = vmor %vm379, %vm380
  %v382 = vsel %vm381, %v374, %v378
  %v383 = vand.u32 2147483647, %v373
  %vm384 = vcmp.eq.f32.partialorder %v383, 8.507059e+37
  %v385 = vand.u32 %v373, 2147483648
  %v386 = vor.u32 1.1754944e-38, %v385
  %v387 = vsel %vm384, %v386, %v382
  %v388 = vmul.f32 1.0, %v387
  %v389 = vmul.f32 %v368, 1.442695
  %v390 = vpow.pop %v389
  %v391 = vadd.f32 %v390, 1.0
  %v392 = vrcp.pop %v391
  %v393 = vmul.f32 %v391, %v392
  %v394 = vsub.f32 1.0, %v393
  %v395 = vmul.f32 %v392, %v394
  %v396 = vadd.f32 %v392, %v395
  %vm397 = vweird.f32 %v391
  %vm398 = vweird.f32 %v392
  %vm399 = vmor %vm397, %vm398
  %v400 = vsel %vm399, %v392, %v396
  %v401 = vand.u32 2147483647, %v391
  %vm402 = vcmp.eq.f32.partialorder %v401, 8.507059e+37
  %v403 = vand.u32 %v391, 2147483648
  %v404 = vor.u32 1.1754944e-38, %v403
  %v405 = vsel %vm402, %v404, %v400
  %v406 = vmul.f32 1.0, %v405
  %407 = vst [vmem:[%s11] sm:$0x1] %v406
  %408 = vst [vmem:[%s11 + $0x1] sm:$0x1] %v388
  // Predicated region
  $region46: #{classifier_forward.1} parent=0 // pred_check
    _
  $region47: #{classifier_forward.1} parent=0 // pred_check_branch
    %410 = sbr.rel (0) target = $region49
  $region48: #{classifier_forward.1} parent=0 // pred_region
    _
  $region49: #{classifier_forward.1} parent=0 // pred_fallthru
    _
  // Predicated region
  $region50: #{classifier_forward.1} parent=0 // pred_check
    _
  $region51: #{classifier_forward.1} parent=0 // pred_check_branch
    %412 = sbr.rel (0) target = $region53
  $region52: #{classifier_forward.1} parent=0 // pred_region
    _
  $region53: #{classifier_forward.1} parent=0 // pred_fallthru
    _

</llo_original>
